<compile_context>
chip_gen: v6e
topology: v6e:2x2x1
jax: 0.10.0
libtpu: 0.0.40
codegen_flags: <defaults>
</compile_context>

<pallas_src>
import functools

import jax
import jax.numpy as jnp
from jax import lax
from jax.experimental import pallas as pl
from jax.experimental.pallas import tpu as pltpu

N_IN, N_HIDDEN, N_OUT = 3, 5, 2

LANES = 128                       # lane width of a vreg
SUB_ROWS = 32                     # sublane-rows per inner-loop step
CHUNK = SUB_ROWS * LANES          # 4096 samples per inner-loop step
DEFAULT_TILE_B = 256 * 1024       # samples per grid step (~10.5 MiB dbl-buffered)


def _round_up(n, m):
    return ((n + m - 1) // m) * m


def _cdiv(a, b):
    return (a + b - 1) // b


def mlp2_kernel(w0_ref, b0_ref, w1_ref, b1_ref, x_ref, o_ref):
    """w*/b* are SMEM scalars; x_ref [3, TR, 128], o_ref [2, TR, 128] in VMEM."""
    # Hoist every SMEM scalar read out of the sub-chunk loop.
    w0 = [[w0_ref[j, k] for k in range(N_IN)] for j in range(N_HIDDEN)]
    b0 = [b0_ref[j, 0] for j in range(N_HIDDEN)]
    w1 = [[w1_ref[i, j] for j in range(N_HIDDEN)] for i in range(N_OUT)]
    b1 = [b1_ref[i, 0] for i in range(N_OUT)]

    n_sub = x_ref.shape[1] // SUB_ROWS  # static; TR is a multiple of SUB_ROWS

    def body(c, carry):
        off = pl.multiple_of(c * SUB_ROWS, SUB_ROWS)
        # Three dense [32, 128] feature slabs (full vreg utilization).
        xs = [x_ref[k, pl.ds(off, SUB_ROWS), :] for k in range(N_IN)]

        # Layer 0: h[j] = tanh(sum_k w0[j,k] * x[k] + b0[j])   (VPU FMAs + EUP)
        h = []
        for j in range(N_HIDDEN):
            acc = xs[0] * w0[j][0]
            for k in range(1, N_IN):
                acc = acc + xs[k] * w0[j][k]
            h.append(jnp.tanh(acc + b0[j]))

        # Layer 1: y[i] = tanh(sum_j w1[i,j] * h[j] + b1[i]); store rows
        # directly (no sublane concat).
        for i in range(N_OUT):
            acc = h[0] * w1[i][0]
            for j in range(1, N_HIDDEN):
                acc = acc + h[j] * w1[i][j]
            o_ref[i, pl.ds(off, SUB_ROWS), :] = jnp.tanh(acc + b1[i])
        return carry

    lax.fori_loop(0, n_sub, body, 0)


@functools.partial(jax.jit, static_argnames=("tile_b",))
def mlp2_forward(x, w0, b0, w1, b1, *, tile_b=DEFAULT_TILE_B):
    """x: [B, 3]; w0: [5, 3]; b0: [5]; w1: [2, 5]; b1: [2]  ->  [B, 2] f32.

    Weights/biases use the PyTorch nn.Linear layout ([out, in] / [out]).
    """
    B = x.shape[0]
    B_pad = _round_up(max(B, 1), CHUNK)

    # Samples per grid step: as large as requested (amortizes the ~0.35 us
    # per-step overhead) but never larger than the batch.
    tb = min(_round_up(tile_b, CHUNK), B_pad)
    steps = _cdiv(B_pad, tb)
    # v7x megacore: make sure both TensorCores get at least one grid step.
    if steps == 1 and B_pad > CHUNK:
        tb = _round_up(_cdiv(B_pad, 2), CHUNK)
        steps = _cdiv(B_pad, tb)

    G = B_pad // LANES   # sublane-rows in the whole (padded) batch
    TR = tb // LANES     # sublane-rows per grid step

    # Feature-major, (sublane, lane)-dense view of x:  [3, G, 128].
    xT = jnp.pad(x.astype(jnp.float32).T, ((0, 0), (0, B_pad - B)))
    x3 = xT.reshape(N_IN, G, LANES)

    b0c = b0.reshape(N_HIDDEN, 1).astype(jnp.float32)
    b1c = b1.reshape(N_OUT, 1).astype(jnp.float32)

    smem = pltpu.MemorySpace.SMEM
    vmem = pltpu.MemorySpace.VMEM

    yT3 = pl.pallas_call(
        mlp2_kernel,
        out_shape=jax.ShapeDtypeStruct((N_OUT, G, LANES), jnp.float32),
        grid=(steps,),
        in_specs=[
            pl.BlockSpec((N_HIDDEN, N_IN), lambda i: (0, 0), memory_space=smem),
            pl.BlockSpec((N_HIDDEN, 1), lambda i: (0, 0), memory_space=smem),
            pl.BlockSpec((N_OUT, N_HIDDEN), lambda i: (0, 0), memory_space=smem),
            pl.BlockSpec((N_OUT, 1), lambda i: (0, 0), memory_space=smem),
            pl.BlockSpec((N_IN, TR, LANES), lambda i: (0, i, 0), memory_space=vmem),
        ],
        out_specs=pl.BlockSpec((N_OUT, TR, LANES), lambda i: (0, i, 0),
                               memory_space=vmem),
        compiler_params=pltpu.CompilerParams(
            dimension_semantics=("parallel",),  # megacore sharding on v7x
            # Let XLA fuse the x transpose/pad/reshape into the operand.
            allow_input_fusion=[False, False, False, False, True],
        ),
        cost_estimate=pl.CostEstimate(
            flops=2 * B_pad * (N_IN * N_HIDDEN + N_HIDDEN * N_OUT),
            transcendentals=(N_HIDDEN + N_OUT) * B_pad,
            bytes_accessed=(N_IN + N_OUT) * 4 * B_pad,
        ),
    )(w0.astype(jnp.float32), b0c, w1.astype(jnp.float32), b1c, x3)

    # Back to the module's [B, 2] layout (wrapper transpose; see TODO above).
    return yT3.reshape(N_OUT, B_pad)[:, :B].T


def init_params(key):
    """nn.Linear-style init: uniform(-1/sqrt(fan_in), +1/sqrt(fan_in))."""
    k0w, k0b, k1w, k1b = jax.random.split(key, 4)
    bound0 = 1.0 / (N_IN ** 0.5)
    bound1 = 1.0 / (N_HIDDEN ** 0.5)
    w0 = jax.random.uniform(k0w, (N_HIDDEN, N_IN), jnp.float32, -bound0, bound0)
    b0 = jax.random.uniform(k0b, (N_HIDDEN,), jnp.float32, -bound0, bound0)
    w1 = jax.random.uniform(k1w, (N_OUT, N_HIDDEN), jnp.float32, -bound1, bound1)
    b1 = jax.random.uniform(k1b, (N_OUT,), jnp.float32, -bound1, bound1)
    return w0, b0, w1, b1


if __name__ == "__main__":
    key = jax.random.PRNGKey(0)
    kx, kp = jax.random.split(key)
    w0, b0, w1, b1 = init_params(kp)

    # Cases: tiny batch (single partial tile), forced multi-step grid
    # (small tile_b), and the megacore-split + ragged-last-block path.
    for B, tb_arg in ((8, DEFAULT_TILE_B), (20000, 4096), (9000, DEFAULT_TILE_B)):
        x = jax.random.normal(jax.random.fold_in(kx, B), (B, N_IN),
                              dtype=jnp.float32)
        y = jax.block_until_ready(mlp2_forward(x, w0, b0, w1, b1, tile_b=tb_arg))
        y_ref = jnp.tanh(jnp.tanh(x @ w0.T + b0) @ w1.T + b1)
        assert y.shape == (B, N_OUT)
        assert jnp.allclose(y, y_ref, atol=1e-5, rtol=1e-5)

    print("KERNEL_OK")
</pallas_src>

<mosaic_0001>
module attributes {stable_mosaic.version = 11 : i64} {
  func.func @mlp2_kernel(%arg0: i32, %arg1: memref<5x3xf32, #tpu.memory_space<smem>>, %arg2: memref<5x1xf32, #tpu.memory_space<smem>>, %arg3: memref<2x5xf32, #tpu.memory_space<smem>>, %arg4: memref<2x1xf32, #tpu.memory_space<smem>>, %arg5: memref<3x32x128xf32, #tpu.memory_space<vmem>>, %arg6: memref<2x32x128xf32, #tpu.memory_space<vmem>>) attributes {dimension_semantics = [#tpu.dimension_semantics<parallel>], iteration_bounds = array<i64: 1>, scalar_prefetch = 0 : i64, scratch_operands = 0 : i64, tpu.core_type = #tpu.core_type<tc>, window_params = [{transform_indices = @transform_0, window_bounds = array<i64: 5, 3>}, {transform_indices = @transform_1, window_bounds = array<i64: 5, 1>}, {transform_indices = @transform_2, window_bounds = array<i64: 2, 5>}, {transform_indices = @transform_3, window_bounds = array<i64: 2, 1>}, {transform_indices = @transform_4, window_bounds = array<i64: 3, 32, 128>}, {transform_indices = @transform_5, window_bounds = array<i64: 2, 32, 128>}]} {
    %c0 = arith.constant 0 : index
    %c0_0 = arith.constant 0 : index
    %0 = memref.load %arg1[%c0, %c0_0] : memref<5x3xf32, #tpu.memory_space<smem>>
    %c0_1 = arith.constant 0 : index
    %c1 = arith.constant 1 : index
    %1 = memref.load %arg1[%c0_1, %c1] : memref<5x3xf32, #tpu.memory_space<smem>>
    %c0_2 = arith.constant 0 : index
    %c2 = arith.constant 2 : index
    %2 = memref.load %arg1[%c0_2, %c2] : memref<5x3xf32, #tpu.memory_space<smem>>
    %c1_3 = arith.constant 1 : index
    %c0_4 = arith.constant 0 : index
    %3 = memref.load %arg1[%c1_3, %c0_4] : memref<5x3xf32, #tpu.memory_space<smem>>
    %c1_5 = arith.constant 1 : index
    %c1_6 = arith.constant 1 : index
    %4 = memref.load %arg1[%c1_5, %c1_6] : memref<5x3xf32, #tpu.memory_space<smem>>
    %c1_7 = arith.constant 1 : index
    %c2_8 = arith.constant 2 : index
    %5 = memref.load %arg1[%c1_7, %c2_8] : memref<5x3xf32, #tpu.memory_space<smem>>
    %c2_9 = arith.constant 2 : index
    %c0_10 = arith.constant 0 : index
    %6 = memref.load %arg1[%c2_9, %c0_10] : memref<5x3xf32, #tpu.memory_space<smem>>
    %c2_11 = arith.constant 2 : index
    %c1_12 = arith.constant 1 : index
    %7 = memref.load %arg1[%c2_11, %c1_12] : memref<5x3xf32, #tpu.memory_space<smem>>
    %c2_13 = arith.constant 2 : index
    %c2_14 = arith.constant 2 : index
    %8 = memref.load %arg1[%c2_13, %c2_14] : memref<5x3xf32, #tpu.memory_space<smem>>
    %c3 = arith.constant 3 : index
    %c0_15 = arith.constant 0 : index
    %9 = memref.load %arg1[%c3, %c0_15] : memref<5x3xf32, #tpu.memory_space<smem>>
    %c3_16 = arith.constant 3 : index
    %c1_17 = arith.constant 1 : index
    %10 = memref.load %arg1[%c3_16, %c1_17] : memref<5x3xf32, #tpu.memory_space<smem>>
    %c3_18 = arith.constant 3 : index
    %c2_19 = arith.constant 2 : index
    %11 = memref.load %arg1[%c3_18, %c2_19] : memref<5x3xf32, #tpu.memory_space<smem>>
    %c4 = arith.constant 4 : index
    %c0_20 = arith.constant 0 : index
    %12 = memref.load %arg1[%c4, %c0_20] : memref<5x3xf32, #tpu.memory_space<smem>>
    %c4_21 = arith.constant 4 : index
    %c1_22 = arith.constant 1 : index
    %13 = memref.load %arg1[%c4_21, %c1_22] : memref<5x3xf32, #tpu.memory_space<smem>>
    %c4_23 = arith.constant 4 : index
    %c2_24 = arith.constant 2 : index
    %14 = memref.load %arg1[%c4_23, %c2_24] : memref<5x3xf32, #tpu.memory_space<smem>>
    %c0_25 = arith.constant 0 : index
    %c0_26 = arith.constant 0 : index
    %15 = memref.load %arg2[%c0_25, %c0_26] : memref<5x1xf32, #tpu.memory_space<smem>>
    %c1_27 = arith.constant 1 : index
    %c0_28 = arith.constant 0 : index
    %16 = memref.load %arg2[%c1_27, %c0_28] : memref<5x1xf32, #tpu.memory_space<smem>>
    %c2_29 = arith.constant 2 : index
    %c0_30 = arith.constant 0 : index
    %17 = memref.load %arg2[%c2_29, %c0_30] : memref<5x1xf32, #tpu.memory_space<smem>>
    %c3_31 = arith.constant 3 : index
    %c0_32 = arith.constant 0 : index
    %18 = memref.load %arg2[%c3_31, %c0_32] : memref<5x1xf32, #tpu.memory_space<smem>>
    %c4_33 = arith.constant 4 : index
    %c0_34 = arith.constant 0 : index
    %19 = memref.load %arg2[%c4_33, %c0_34] : memref<5x1xf32, #tpu.memory_space<smem>>
    %c0_35 = arith.constant 0 : index
    %c0_36 = arith.constant 0 : index
    %20 = memref.load %arg3[%c0_35, %c0_36] : memref<2x5xf32, #tpu.memory_space<smem>>
    %c0_37 = arith.constant 0 : index
    %c1_38 = arith.constant 1 : index
    %21 = memref.load %arg3[%c0_37, %c1_38] : memref<2x5xf32, #tpu.memory_space<smem>>
    %c0_39 = arith.constant 0 : index
    %c2_40 = arith.constant 2 : index
    %22 = memref.load %arg3[%c0_39, %c2_40] : memref<2x5xf32, #tpu.memory_space<smem>>
    %c0_41 = arith.constant 0 : index
    %c3_42 = arith.constant 3 : index
    %23 = memref.load %arg3[%c0_41, %c3_42] : memref<2x5xf32, #tpu.memory_space<smem>>
    %c0_43 = arith.constant 0 : index
    %c4_44 = arith.constant 4 : index
    %24 = memref.load %arg3[%c0_43, %c4_44] : memref<2x5xf32, #tpu.memory_space<smem>>
    %c1_45 = arith.constant 1 : index
    %c0_46 = arith.constant 0 : index
    %25 = memref.load %arg3[%c1_45, %c0_46] : memref<2x5xf32, #tpu.memory_space<smem>>
    %c1_47 = arith.constant 1 : index
    %c1_48 = arith.constant 1 : index
    %26 = memref.load %arg3[%c1_47, %c1_48] : memref<2x5xf32, #tpu.memory_space<smem>>
    %c1_49 = arith.constant 1 : index
    %c2_50 = arith.constant 2 : index
    %27 = memref.load %arg3[%c1_49, %c2_50] : memref<2x5xf32, #tpu.memory_space<smem>>
    %c1_51 = arith.constant 1 : index
    %c3_52 = arith.constant 3 : index
    %28 = memref.load %arg3[%c1_51, %c3_52] : memref<2x5xf32, #tpu.memory_space<smem>>
    %c1_53 = arith.constant 1 : index
    %c4_54 = arith.constant 4 : index
    %29 = memref.load %arg3[%c1_53, %c4_54] : memref<2x5xf32, #tpu.memory_space<smem>>
    %c0_55 = arith.constant 0 : index
    %c0_56 = arith.constant 0 : index
    %30 = memref.load %arg4[%c0_55, %c0_56] : memref<2x1xf32, #tpu.memory_space<smem>>
    %c1_57 = arith.constant 1 : index
    %c0_58 = arith.constant 0 : index
    %31 = memref.load %arg4[%c1_57, %c0_58] : memref<2x1xf32, #tpu.memory_space<smem>>
    %c0_i32 = arith.constant 0 : i32
    %c32_i32 = arith.constant 32 : i32
    %32 = arith.muli %c0_i32, %c32_i32 : i32
    %33 = tpu.assume_multiple %32, 32 : i32
    %c0_59 = arith.constant 0 : index
    %34 = arith.index_cast %33 : i32 to index
    %c0_60 = arith.constant 0 : index
    %35 = vector.load %arg5[%c0_59, %34, %c0_60] : memref<3x32x128xf32, #tpu.memory_space<vmem>>, vector<1x32x128xf32>
    %36 = vector.shape_cast %35 : vector<1x32x128xf32> to vector<32x128xf32>
    %c1_61 = arith.constant 1 : index
    %37 = arith.index_cast %33 : i32 to index
    %c0_62 = arith.constant 0 : index
    %38 = vector.load %arg5[%c1_61, %37, %c0_62] : memref<3x32x128xf32, #tpu.memory_space<vmem>>, vector<1x32x128xf32>
    %39 = vector.shape_cast %38 : vector<1x32x128xf32> to vector<32x128xf32>
    %c2_63 = arith.constant 2 : index
    %40 = arith.index_cast %33 : i32 to index
    %c0_64 = arith.constant 0 : index
    %41 = vector.load %arg5[%c2_63, %40, %c0_64] : memref<3x32x128xf32, #tpu.memory_space<vmem>>, vector<1x32x128xf32>
    %42 = vector.shape_cast %41 : vector<1x32x128xf32> to vector<32x128xf32>
    %43 = vector.broadcast %0 : f32 to vector<32x128xf32>
    %44 = arith.mulf %36, %43 : vector<32x128xf32>
    %45 = vector.broadcast %1 : f32 to vector<32x128xf32>
    %46 = arith.mulf %39, %45 : vector<32x128xf32>
    %47 = arith.addf %44, %46 : vector<32x128xf32>
    %48 = vector.broadcast %2 : f32 to vector<32x128xf32>
    %49 = arith.mulf %42, %48 : vector<32x128xf32>
    %50 = arith.addf %47, %49 : vector<32x128xf32>
    %51 = vector.broadcast %15 : f32 to vector<32x128xf32>
    %52 = arith.addf %50, %51 : vector<32x128xf32>
    %53 = math.tanh %52 : vector<32x128xf32>
    %54 = vector.broadcast %3 : f32 to vector<32x128xf32>
    %55 = arith.mulf %36, %54 : vector<32x128xf32>
    %56 = vector.broadcast %4 : f32 to vector<32x128xf32>
    %57 = arith.mulf %39, %56 : vector<32x128xf32>
    %58 = arith.addf %55, %57 : vector<32x128xf32>
    %59 = vector.broadcast %5 : f32 to vector<32x128xf32>
    %60 = arith.mulf %42, %59 : vector<32x128xf32>
    %61 = arith.addf %58, %60 : vector<32x128xf32>
    %62 = vector.broadcast %16 : f32 to vector<32x128xf32>
    %63 = arith.addf %61, %62 : vector<32x128xf32>
    %64 = math.tanh %63 : vector<32x128xf32>
    %65 = vector.broadcast %6 : f32 to vector<32x128xf32>
    %66 = arith.mulf %36, %65 : vector<32x128xf32>
    %67 = vector.broadcast %7 : f32 to vector<32x128xf32>
    %68 = arith.mulf %39, %67 : vector<32x128xf32>
    %69 = arith.addf %66, %68 : vector<32x128xf32>
    %70 = vector.broadcast %8 : f32 to vector<32x128xf32>
    %71 = arith.mulf %42, %70 : vector<32x128xf32>
    %72 = arith.addf %69, %71 : vector<32x128xf32>
    %73 = vector.broadcast %17 : f32 to vector<32x128xf32>
    %74 = arith.addf %72, %73 : vector<32x128xf32>
    %75 = math.tanh %74 : vector<32x128xf32>
    %76 = vector.broadcast %9 : f32 to vector<32x128xf32>
    %77 = arith.mulf %36, %76 : vector<32x128xf32>
    %78 = vector.broadcast %10 : f32 to vector<32x128xf32>
    %79 = arith.mulf %39, %78 : vector<32x128xf32>
    %80 = arith.addf %77, %79 : vector<32x128xf32>
    %81 = vector.broadcast %11 : f32 to vector<32x128xf32>
    %82 = arith.mulf %42, %81 : vector<32x128xf32>
    %83 = arith.addf %80, %82 : vector<32x128xf32>
    %84 = vector.broadcast %18 : f32 to vector<32x128xf32>
    %85 = arith.addf %83, %84 : vector<32x128xf32>
    %86 = math.tanh %85 : vector<32x128xf32>
    %87 = vector.broadcast %12 : f32 to vector<32x128xf32>
    %88 = arith.mulf %36, %87 : vector<32x128xf32>
    %89 = vector.broadcast %13 : f32 to vector<32x128xf32>
    %90 = arith.mulf %39, %89 : vector<32x128xf32>
    %91 = arith.addf %88, %90 : vector<32x128xf32>
    %92 = vector.broadcast %14 : f32 to vector<32x128xf32>
    %93 = arith.mulf %42, %92 : vector<32x128xf32>
    %94 = arith.addf %91, %93 : vector<32x128xf32>
    %95 = vector.broadcast %19 : f32 to vector<32x128xf32>
    %96 = arith.addf %94, %95 : vector<32x128xf32>
    %97 = math.tanh %96 : vector<32x128xf32>
    %98 = vector.broadcast %20 : f32 to vector<32x128xf32>
    %99 = arith.mulf %53, %98 : vector<32x128xf32>
    %100 = vector.broadcast %21 : f32 to vector<32x128xf32>
    %101 = arith.mulf %64, %100 : vector<32x128xf32>
    %102 = arith.addf %99, %101 : vector<32x128xf32>
    %103 = vector.broadcast %22 : f32 to vector<32x128xf32>
    %104 = arith.mulf %75, %103 : vector<32x128xf32>
    %105 = arith.addf %102, %104 : vector<32x128xf32>
    %106 = vector.broadcast %23 : f32 to vector<32x128xf32>
    %107 = arith.mulf %86, %106 : vector<32x128xf32>
    %108 = arith.addf %105, %107 : vector<32x128xf32>
    %109 = vector.broadcast %24 : f32 to vector<32x128xf32>
    %110 = arith.mulf %97, %109 : vector<32x128xf32>
    %111 = arith.addf %108, %110 : vector<32x128xf32>
    %112 = vector.broadcast %30 : f32 to vector<32x128xf32>
    %113 = arith.addf %111, %112 : vector<32x128xf32>
    %114 = math.tanh %113 : vector<32x128xf32>
    %c0_65 = arith.constant 0 : index
    %115 = arith.index_cast %33 : i32 to index
    %c0_66 = arith.constant 0 : index
    %116 = vector.load %arg6[%c0_65, %115, %c0_66] : memref<2x32x128xf32, #tpu.memory_space<vmem>>, vector<1x32x128xf32>
    %117 = vector.shape_cast %116 : vector<1x32x128xf32> to vector<32x128xf32>
    %118 = vector.shape_cast %114 : vector<32x128xf32> to vector<1x32x128xf32>
    tpu.vector_store %arg6[%c0_65, %115, %c0_66], %118 {strides = array<i32>} : memref<2x32x128xf32, #tpu.memory_space<vmem>>, vector<1x32x128xf32>,
    %119 = vector.broadcast %25 : f32 to vector<32x128xf32>
    %120 = arith.mulf %53, %119 : vector<32x128xf32>
    %121 = vector.broadcast %26 : f32 to vector<32x128xf32>
    %122 = arith.mulf %64, %121 : vector<32x128xf32>
    %123 = arith.addf %120, %122 : vector<32x128xf32>
    %124 = vector.broadcast %27 : f32 to vector<32x128xf32>
    %125 = arith.mulf %75, %124 : vector<32x128xf32>
    %126 = arith.addf %123, %125 : vector<32x128xf32>
    %127 = vector.broadcast %28 : f32 to vector<32x128xf32>
    %128 = arith.mulf %86, %127 : vector<32x128xf32>
    %129 = arith.addf %126, %128 : vector<32x128xf32>
    %130 = vector.broadcast %29 : f32 to vector<32x128xf32>
    %131 = arith.mulf %97, %130 : vector<32x128xf32>
    %132 = arith.addf %129, %131 : vector<32x128xf32>
    %133 = vector.broadcast %31 : f32 to vector<32x128xf32>
    %134 = arith.addf %132, %133 : vector<32x128xf32>
    %135 = math.tanh %134 : vector<32x128xf32>
    %c1_67 = arith.constant 1 : index
    %136 = arith.index_cast %33 : i32 to index
    %c0_68 = arith.constant 0 : index
    %137 = vector.load %arg6[%c1_67, %136, %c0_68] : memref<2x32x128xf32, #tpu.memory_space<vmem>>, vector<1x32x128xf32>
    %138 = vector.shape_cast %137 : vector<1x32x128xf32> to vector<32x128xf32>
    %139 = vector.shape_cast %135 : vector<32x128xf32> to vector<1x32x128xf32>
    tpu.vector_store %arg6[%c1_67, %136, %c0_68], %139 {strides = array<i32>} : memref<2x32x128xf32, #tpu.memory_space<vmem>>, vector<1x32x128xf32>,
    %c1_i32 = arith.constant 1 : i32
    return
  }
  func.func @transform_0(%arg0: i32) -> (i32, i32) {
    %c0_i32 = arith.constant 0 : i32
    %c0_i32_0 = arith.constant 0 : i32
    %c0_i32_1 = arith.constant 0 : i32
    return %c0_i32, %c0_i32_0 : i32, i32
  }
  func.func @transform_1(%arg0: i32) -> (i32, i32) {
    %c0_i32 = arith.constant 0 : i32
    %c0_i32_0 = arith.constant 0 : i32
    %c0_i32_1 = arith.constant 0 : i32
    return %c0_i32, %c0_i32_0 : i32, i32
  }
  func.func @transform_2(%arg0: i32) -> (i32, i32) {
    %c0_i32 = arith.constant 0 : i32
    %c0_i32_0 = arith.constant 0 : i32
    %c0_i32_1 = arith.constant 0 : i32
    return %c0_i32, %c0_i32_0 : i32, i32
  }
  func.func @transform_3(%arg0: i32) -> (i32, i32) {
    %c0_i32 = arith.constant 0 : i32
    %c0_i32_0 = arith.constant 0 : i32
    %c0_i32_1 = arith.constant 0 : i32
    return %c0_i32, %c0_i32_0 : i32, i32
  }
  func.func @transform_4(%arg0: i32) -> (i32, i32, i32) {
    %c0_i32 = arith.constant 0 : i32
    %c0_i32_0 = arith.constant 0 : i32
    %c0_i32_1 = arith.constant 0 : i32
    return %c0_i32, %arg0, %c0_i32_0 : i32, i32, i32
  }
  func.func @transform_5(%arg0: i32) -> (i32, i32, i32) {
    %c0_i32 = arith.constant 0 : i32
    %c0_i32_0 = arith.constant 0 : i32
    %c0_i32_1 = arith.constant 0 : i32
    return %c0_i32, %arg0, %c0_i32_0 : i32, i32, i32
  }
}

</mosaic_0001>

<llo_original>
// kernel: mlp2_forward.2
$region0: #{mlp2_forward.2}
  #allocation0 [shape = 'u32[]', space=smem, size = 0x4, offset = 0x4, fixed_abs, tag = 'smem constant byte address 0x4 - core index']
  #allocation1 [shape = 'u32[144,128]{1,0:T(1,128)}', space=vmem, size = 0x12000, scoped, tag = 'internal scratch']
  %s0 = inlined_call_operand.vmem [shape: f32[5,3], index: 0, kind: input, shape index: {}]
  %s1 = inlined_call_operand.vmem [shape: f32[5,1], index: 1, kind: input, shape index: {}]
  %s2 = inlined_call_operand.vmem [shape: f32[2,5], index: 2, kind: input, shape index: {}]
  %s3 = inlined_call_operand.vmem [shape: f32[2,1], index: 3, kind: input, shape index: {}]
  %s4 = inlined_call_operand.vmem [shape: f32[1,3,32,128], index: 4, kind: input, shape index: {}]
  %s5 = inlined_call_operand.vmem [shape: f32[2,32,128], index: 5, kind: output, shape index: {}]
  %s6 = sld [smem:[#allocation0]]
  $region46: #{mlp2_forward.2} parent=0
    _
  %s8 = ssub.s32 1, %s6
  %s9 = scalar_select 0, %s8, %s6
  $region1: #{mlp2_forward.2} parent=0
    #allocation2 [shape = 'u8[4096]{0}', space=smem, size = 0x1000, scoped, tag = 'input window, operand 0, single buffered']
    #allocation3 [shape = 's32[1]{0}', space=sflag, size = 0x4, scoped, tag = 'scoped memory for mlp2_forward.2']
    #allocation4 [shape = 'u8[4096]{0}', space=smem, size = 0x1000, scoped, tag = 'input window, operand 1, single buffered']
    #allocation5 [shape = 's32[1]{0}', space=sflag, size = 0x4, scoped, tag = 'scoped memory for mlp2_forward.2']
    #allocation6 [shape = 'u8[1024]{0}', space=smem, size = 0x400, scoped, tag = 'input window, operand 2, single buffered']
    #allocation7 [shape = 'u8[1024]{0}', space=smem, size = 0x400, scoped, tag = 'input window, operand 3, single buffered']
    #allocation8 [shape = 's32[1]{0}', space=sflag, size = 0x4, scoped, tag = 'scoped memory for mlp2_forward.2']
    #allocation9 [shape = 'u8[49152]{0}', space=vmem, size = 0xc000, dematerialized = true, scoped, tag = 'FusionAdapter Buffer %fusion.1 = f32[3,32,128]{2,1,0:T(8,128)} fusion(%param_4.1), kind=kLoop, calls=%fused_computation.2.clone, metadata={op_name="jit(mlp2_forward)/reshape" stack_frame_id=9}']
    %10 = vsyncpa [#allocation3], 0
    %11 = vsyncpa [#allocation5], 0
    %12 = vsyncpa [#allocation8], 0
    // Predicated region
    $region2: #{mlp2_forward.2} parent=1 // pred_check
      _
    $region3: #{mlp2_forward.2} parent=1 // pred_check_branch
      %14 = sbr.rel (0) target = $region5
    $region4: #{mlp2_forward.2} parent=1 // pred_region
      %s16 = ssub.s32 128, 128
      %17 = vsyncadd [#allocation3], %s16
      %s19 = sshll.u32 %s0, 4
      %s20 = int_to_ptr.vmem [resolvable:$true] %s19
      %22 = dma.vmem_to_smem %s20, 128, [#allocation2], [#allocation3]
    $region5: #{mlp2_forward.2} parent=1 // pred_fallthru
      _
    // Predicated region
    $region6: #{mlp2_forward.2} parent=1 // pred_check
      _
    $region7: #{mlp2_forward.2} parent=1 // pred_check_branch
      %24 = sbr.rel (0) target = $region9
    $region8: #{mlp2_forward.2} parent=1 // pred_region
      %s26 = ssub.s32 128, 128
      %27 = vsyncadd [#allocation5], %s26
      %s29 = sshll.u32 %s1, 4
      %s30 = int_to_ptr.vmem [resolvable:$true] %s29
      %32 = dma.vmem_to_smem %s30, 128, [#allocation4], [#allocation5]
    $region9: #{mlp2_forward.2} parent=1 // pred_fallthru
      _
    // Predicated region
    $region10: #{mlp2_forward.2} parent=1 // pred_check
      _
    $region11: #{mlp2_forward.2} parent=1 // pred_check_branch
      %34 = sbr.rel (0) target = $region13
    $region12: #{mlp2_forward.2} parent=1 // pred_region
      %s36 = ssub.s32 32, 32
      %37 = vsyncadd [#allocation5], %s36
      %s39 = sshll.u32 %s2, 4
      %s40 = int_to_ptr.vmem [resolvable:$true] %s39
      %42 = dma.vmem_to_smem %s40, 32, [#allocation6], [#allocation5]
    $region13: #{mlp2_forward.2} parent=1 // pred_fallthru
      _
    // Predicated region
    $region14: #{mlp2_forward.2} parent=1 // pred_check
      _
    $region15: #{mlp2_forward.2} parent=1 // pred_check_branch
      %44 = sbr.rel (0) target = $region17
    $region16: #{mlp2_forward.2} parent=1 // pred_region
      %s46 = ssub.s32 32, 32
      %47 = vsyncadd [#allocation8], %s46
      %s49 = sshll.u32 %s3, 4
      %s50 = int_to_ptr.vmem [resolvable:$true] %s49
      %52 = dma.vmem_to_smem %s50, 32, [#allocation7], [#allocation8]
    $region17: #{mlp2_forward.2} parent=1 // pred_fallthru
      _
    // Predicated region
    $region18: #{mlp2_forward.2} parent=1 // pred_check
      _
    $region19: #{mlp2_forward.2} parent=1 // pred_check_branch
      %54 = sbr.rel (0) target = $region21
    $region20: #{mlp2_forward.2} parent=1 // pred_region
      _
    $region21: #{mlp2_forward.2} parent=1 // pred_fallthru
      _
    // Predicated region
    $region22: #{mlp2_forward.2} parent=1 // pred_check
      _
    $region23: #{mlp2_forward.2} parent=1 // pred_check_branch
      %56 = sbr.rel (0) target = $region25
    $region24: #{mlp2_forward.2} parent=1 // pred_region
      %57 = dma.done [#allocation3], 128
    $region25: #{mlp2_forward.2} parent=1 // pred_fallthru
      _
    // Predicated region
    $region26: #{mlp2_forward.2} parent=1 // pred_check
      _
    $region27: #{mlp2_forward.2} parent=1 // pred_check_branch
      %59 = sbr.rel (0) target = $region29
    $region28: #{mlp2_forward.2} parent=1 // pred_region
      %60 = dma.done [#allocation5], 128
    $region29: #{mlp2_forward.2} parent=1 // pred_fallthru
      _
    // Predicated region
    $region30: #{mlp2_forward.2} parent=1 // pred_check
      _
    $region31: #{mlp2_forward.2} parent=1 // pred_check_branch
      %62 = sbr.rel (0) target = $region33
    $region32: #{mlp2_forward.2} parent=1 // pred_region
      %63 = dma.done [#allocation5], 32
    $region33: #{mlp2_forward.2} parent=1 // pred_fallthru
      _
    // Predicated region
    $region34: #{mlp2_forward.2} parent=1 // pred_check
      _
    $region35: #{mlp2_forward.2} parent=1 // pred_check_branch
      %65 = sbr.rel (0) target = $region37
    $region36: #{mlp2_forward.2} parent=1 // pred_region
      %66 = dma.done [#allocation8], 32
    $region37: #{mlp2_forward.2} parent=1 // pred_fallthru
      _
    %67 = sfence
    %v68 = vld [vmem:[%s4] sm:$0xff]
    %s70 = ssub.s32 256, 1
    %71 = vst [vmem:[#allocation9] sm:%s70] %v68
    %s72 = scalar_lea.vmem %s4, 8
    %v73 = vld [vmem:[%s72] sm:$0xff]
    %s74 = scalar_lea.vmem [#allocation9], 8
    %s76 = ssub.s32 256, 1
    %77 = vst [vmem:[%s74] sm:%s76] %v73
    %s78 = scalar_lea.vmem %s4, 16
    %v79 = vld [vmem:[%s78] sm:$0xff]
    %s80 = scalar_lea.vmem [#allocation9], 16
    %s82 = ssub.s32 256, 1
    %83 = vst [vmem:[%s80] sm:%s82] %v79
    %s84 = scalar_lea.vmem %s4, 24
    %v85 = vld [vmem:[%s84] sm:$0xff]
    %s86 = scalar_lea.vmem [#allocation9], 24
    %s88 = ssub.s32 256, 1
    %89 = vst [vmem:[%s86] sm:%s88] %v85
    %s90 = scalar_lea.vmem %s4, 32
    %v91 = vld [vmem:[%s90] sm:$0xff]
    %s92 = scalar_lea.vmem [#allocation9], 32
    %s94 = ssub.s32 256, 1
    %95 = vst [vmem:[%s92] sm:%s94] %v91
    %s96 = scalar_lea.vmem %s4, 40
    %v97 = vld [vmem:[%s96] sm:$0xff]
    %s98 = scalar_lea.vmem [#allocation9], 40
    %s100 = ssub.s32 256, 1
    %101 = vst [vmem:[%s98] sm:%s100] %v97
    %s102 = scalar_lea.vmem %s4, 48
    %v103 = vld [vmem:[%s102] sm:$0xff]
    %s104 = scalar_lea.vmem [#allocation9], 48
    %s106 = ssub.s32 256, 1
    %107 = vst [vmem:[%s104] sm:%s106] %v103
    %s108 = scalar_lea.vmem %s4, 56
    %v109 = vld [vmem:[%s108] sm:$0xff]
    %s110 = scalar_lea.vmem [#allocation9], 56
    %s112 = ssub.s32 256, 1
    %113 = vst [vmem:[%s110] sm:%s112] %v109
    %s114 = scalar_lea.vmem %s4, 64
    %v115 = vld [vmem:[%s114] sm:$0xff]
    %s116 = scalar_lea.vmem [#allocation9], 64
    %s118 = ssub.s32 256, 1
    %119 = vst [vmem:[%s116] sm:%s118] %v115
    %s120 = scalar_lea.vmem %s4, 72
    %v121 = vld [vmem:[%s120] sm:$0xff]
    %s122 = scalar_lea.vmem [#allocation9], 72
    %s124 = ssub.s32 256, 1
    %125 = vst [vmem:[%s122] sm:%s124] %v121
    %s126 = scalar_lea.vmem %s4, 80
    %v127 = vld [vmem:[%s126] sm:$0xff]
    %s128 = scalar_lea.vmem [#allocation9], 80
    %s130 = ssub.s32 256, 1
    %131 = vst [vmem:[%s128] sm:%s130] %v127
    %s132 = scalar_lea.vmem %s4, 88
    %v133 = vld [vmem:[%s132] sm:$0xff]
    %s134 = scalar_lea.vmem [#allocation9], 88
    %s136 = ssub.s32 256, 1
    %137 = vst [vmem:[%s134] sm:%s136] %v133
    %s138 = sld [smem:[#allocation2]]
    %s139 = sld [smem:[#allocation2 + $0x1]]
    %s140 = sld [smem:[#allocation2 + $0x2]]
    %s141 = sld [smem:[#allocation2 + $0x80]]
    %s142 = sld [smem:[#allocation2 + $0x81]]
    %s143 = sld [smem:[#allocation2 + $0x82]]
    %s144 = sld [smem:[#allocation2 + $0x100]]
    %s145 = sld [smem:[#allocation2 + $0x101]]
    %s146 = sld [smem:[#allocation2 + $0x102]]
    %s147 = sld [smem:[#allocation2 + $0x180]]
    %s148 = sld [smem:[#allocation2 + $0x181]]
    %s149 = sld [smem:[#allocation2 + $0x182]]
    %s150 = sld [smem:[#allocation2 + $0x200]]
    %s151 = sld [smem:[#allocation2 + $0x201]]
    %s152 = sld [smem:[#allocation2 + $0x202]]
    %s153 = sld [smem:[#allocation4]]
    %s154 = sld [smem:[#allocation4 + $0x80]]
    %s155 = sld [smem:[#allocation4 + $0x100]]
    %s156 = sld [smem:[#allocation4 + $0x180]]
    %s157 = sld [smem:[#allocation4 + $0x200]]
    %s158 = sld [smem:[#allocation6]]
    %s159 = sld [smem:[#allocation6 + $0x1]]
    %s160 = sld [smem:[#allocation6 + $0x2]]
    %s161 = sld [smem:[#allocation6 + $0x3]]
    %s162 = sld [smem:[#allocation6 + $0x4]]
    %s163 = sld [smem:[#allocation6 + $0x80]]
    %s164 = sld [smem:[#allocation6 + $0x81]]
    %s165 = sld [smem:[#allocation6 + $0x82]]
    %s166 = sld [smem:[#allocation6 + $0x83]]
    %s167 = sld [smem:[#allocation6 + $0x84]]
    %s168 = sld [smem:[#allocation7]]
    %s169 = sld [smem:[#allocation7 + $0x80]]
    %v170 = vld [vmem:[#allocation9] sm:$0xff]
    %v171 = vld [vmem:[#allocation9 + $0x8] sm:$0xff]
    %v172 = vld [vmem:[#allocation9 + $0x10] sm:$0xff]
    %v173 = vld [vmem:[#allocation9 + $0x18] sm:$0xff]
    %s174 = sadd.s32 0, 32
    %s175 = scalar_lea.vmem [#allocation9], %s174
    %v176 = vld [vmem:[%s175] sm:$0xff]
    %v177 = vld [vmem:[%s175 + $0x8] sm:$0xff]
    %v178 = vld [vmem:[%s175 + $0x10] sm:$0xff]
    %v179 = vld [vmem:[%s175 + $0x18] sm:$0xff]
    %s180 = sadd.s32 0, 64
    %s181 = scalar_lea.vmem [#allocation9], %s180
    %v182 = vld [vmem:[%s181] sm:$0xff]
    %v183 = vld [vmem:[%s181 + $0x8] sm:$0xff]
    %v184 = vld [vmem:[%s181 + $0x10] sm:$0xff]
    %v185 = vld [vmem:[%s181 + $0x18] sm:$0xff]
    %v186 = vstv %s138
    %v187 = vmul.f32 %v170, %v186
    %v188 = vmul.f32 %v171, %v186
    %v189 = vmul.f32 %v172, %v186
    %v190 = vmul.f32 %v173, %v186
    %v191 = vstv %s139
    %v192 = vmul.f32 %v176, %v191
    %v193 = vmul.f32 %v177, %v191
    %v194 = vmul.f32 %v178, %v191
    %v195 = vmul.f32 %v179, %v191
    %v196 = vadd.f32 %v187, %v192
    %v197 = vadd.f32 %v188, %v193
    %v198 = vadd.f32 %v189, %v194
    %v199 = vadd.f32 %v190, %v195
    %v200 = vstv %s140
    %v201 = vmul.f32 %v182, %v200
    %v202 = vmul.f32 %v183, %v200
    %v203 = vmul.f32 %v184, %v200
    %v204 = vmul.f32 %v185, %v200
    %v205 = vadd.f32 %v196, %v201
    %v206 = vadd.f32 %v197, %v202
    %v207 = vadd.f32 %v198, %v203
    %v208 = vadd.f32 %v199, %v204
    %v209 = vstv %s153
    %v210 = vadd.f32 %v205, %v209
    %v211 = vadd.f32 %v206, %v209
    %v212 = vadd.f32 %v207, %v209
    %v213 = vadd.f32 %v208, %v209
    %v214 = vtanh.pop %v210
    %v215 = vtanh.pop %v211
    %v216 = vtanh.pop %v212
    %v217 = vtanh.pop %v213
    %v218 = vstv %s141
    %v219 = vmul.f32 %v170, %v218
    %v220 = vmul.f32 %v171, %v218
    %v221 = vmul.f32 %v172, %v218
    %v222 = vmul.f32 %v173, %v218
    %v223 = vstv %s142
    %v224 = vmul.f32 %v176, %v223
    %v225 = vmul.f32 %v177, %v223
    %v226 = vmul.f32 %v178, %v223
    %v227 = vmul.f32 %v179, %v223
    %v228 = vadd.f32 %v219, %v224
    %v229 = vadd.f32 %v220, %v225
    %v230 = vadd.f32 %v221, %v226
    %v231 = vadd.f32 %v222, %v227
    %v232 = vstv %s143
    %v233 = vmul.f32 %v182, %v232
    %v234 = vmul.f32 %v183, %v232
    %v235 = vmul.f32 %v184, %v232
    %v236 = vmul.f32 %v185, %v232
    %v237 = vadd.f32 %v228, %v233
    %v238 = vadd.f32 %v229, %v234
    %v239 = vadd.f32 %v230, %v235
    %v240 = vadd.f32 %v231, %v236
    %v241 = vstv %s154
    %v242 = vadd.f32 %v237, %v241
    %v243 = vadd.f32 %v238, %v241
    %v244 = vadd.f32 %v239, %v241
    %v245 = vadd.f32 %v240, %v241
    %v246 = vtanh.pop %v242
    %v247 = vtanh.pop %v243
    %v248 = vtanh.pop %v244
    %v249 = vtanh.pop %v245
    %v250 = vstv %s144
    %v251 = vmul.f32 %v170, %v250
    %v252 = vmul.f32 %v171, %v250
    %v253 = vmul.f32 %v172, %v250
    %v254 = vmul.f32 %v173, %v250
    %v255 = vstv %s145
    %v256 = vmul.f32 %v176, %v255
    %v257 = vmul.f32 %v177, %v255
    %v258 = vmul.f32 %v178, %v255
    %v259 = vmul.f32 %v179, %v255
    %v260 = vadd.f32 %v251, %v256
    %v261 = vadd.f32 %v252, %v257
    %v262 = vadd.f32 %v253, %v258
    %v263 = vadd.f32 %v254, %v259
    %v264 = vstv %s146
    %v265 = vmul.f32 %v182, %v264
    %v266 = vmul.f32 %v183, %v264
    %v267 = vmul.f32 %v184, %v264
    %v268 = vmul.f32 %v185, %v264
    %v269 = vadd.f32 %v260, %v265
    %v270 = vadd.f32 %v261, %v266
    %v271 = vadd.f32 %v262, %v267
    %v272 = vadd.f32 %v263, %v268
    %v273 = vstv %s155
    %v274 = vadd.f32 %v269, %v273
    %v275 = vadd.f32 %v270, %v273
    %v276 = vadd.f32 %v271, %v273
    %v277 = vadd.f32 %v272, %v273
    %v278 = vtanh.pop %v274
    %v279 = vtanh.pop %v275
    %v280 = vtanh.pop %v276
    %v281 = vtanh.pop %v277
    %v282 = vstv %s147
    %v283 = vmul.f32 %v170, %v282
    %v284 = vmul.f32 %v171, %v282
    %v285 = vmul.f32 %v172, %v282
    %v286 = vmul.f32 %v173, %v282
    %v287 = vstv %s148
    %v288 = vmul.f32 %v176, %v287
    %v289 = vmul.f32 %v177, %v287
    %v290 = vmul.f32 %v178, %v287
    %v291 = vmul.f32 %v179, %v287
    %v292 = vadd.f32 %v283, %v288
    %v293 = vadd.f32 %v284, %v289
    %v294 = vadd.f32 %v285, %v290
    %v295 = vadd.f32 %v286, %v291
    %v296 = vstv %s149
    %v297 = vmul.f32 %v182, %v296
    %v298 = vmul.f32 %v183, %v296
    %v299 = vmul.f32 %v184, %v296
    %v300 = vmul.f32 %v185, %v296
    %v301 = vadd.f32 %v292, %v297
    %v302 = vadd.f32 %v293, %v298
    %v303 = vadd.f32 %v294, %v299
    %v304 = vadd.f32 %v295, %v300
    %v305 = vstv %s156
    %v306 = vadd.f32 %v301, %v305
    %v307 = vadd.f32 %v302, %v305
    %v308 = vadd.f32 %v303, %v305
    %v309 = vadd.f32 %v304, %v305
    %v310 = vtanh.pop %v306
    %v311 = vtanh.pop %v307
    %v312 = vtanh.pop %v308
    %v313 = vtanh.pop %v309
    %v314 = vstv %s150
    %v315 = vmul.f32 %v170, %v314
    %v316 = vmul.f32 %v171, %v314
    %v317 = vmul.f32 %v172, %v314
    %v318 = vmul.f32 %v173, %v314
    %v319 = vstv %s151
    %v320 = vmul.f32 %v176, %v319
    %v321 = vmul.f32 %v177, %v319
    %v322 = vmul.f32 %v178, %v319
    %v323 = vmul.f32 %v179, %v319
    %v324 = vadd.f32 %v315, %v320
    %v325 = vadd.f32 %v316, %v321
    %v326 = vadd.f32 %v317, %v322
    %v327 = vadd.f32 %v318, %v323
    %v328 = vstv %s152
    %v329 = vmul.f32 %v182, %v328
    %v330 = vmul.f32 %v183, %v328
    %v331 = vmul.f32 %v184, %v328
    %v332 = vmul.f32 %v185, %v328
    %v333 = vadd.f32 %v324, %v329
    %v334 = vadd.f32 %v325, %v330
    %v335 = vadd.f32 %v326, %v331
    %v336 = vadd.f32 %v327, %v332
    %v337 = vstv %s157
    %v338 = vadd.f32 %v333, %v337
    %v339 = vadd.f32 %v334, %v337
    %v340 = vadd.f32 %v335, %v337
    %v341 = vadd.f32 %v336, %v337
    %v342 = vtanh.pop %v338
    %v343 = vtanh.pop %v339
    %v344 = vtanh.pop %v340
    %v345 = vtanh.pop %v341
    %v346 = vstv %s158
    %v347 = vmul.f32 %v214, %v346
    %v348 = vmul.f32 %v215, %v346
    %v349 = vmul.f32 %v216, %v346
    %v350 = vmul.f32 %v217, %v346
    %v351 = vstv %s159
    %v352 = vmul.f32 %v246, %v351
    %v353 = vmul.f32 %v247, %v351
    %v354 = vmul.f32 %v248, %v351
    %v355 = vmul.f32 %v249, %v351
    %v356 = vadd.f32 %v347, %v352
    %v357 = vadd.f32 %v348, %v353
    %v358 = vadd.f32 %v349, %v354
    %v359 = vadd.f32 %v350, %v355
    %v360 = vstv %s160
    %v361 = vmul.f32 %v278, %v360
    %v362 = vmul.f32 %v279, %v360
    %v363 = vmul.f32 %v280, %v360
    %v364 = vmul.f32 %v281, %v360
    %v365 = vadd.f32 %v356, %v361
    %v366 = vadd.f32 %v357, %v362
    %v367 = vadd.f32 %v358, %v363
    %v368 = vadd.f32 %v359, %v364
    %v369 = vstv %s161
    %v370 = vmul.f32 %v310, %v369
    %v371 = vmul.f32 %v311, %v369
    %v372 = vmul.f32 %v312, %v369
    %v373 = vmul.f32 %v313, %v369
    %v374 = vadd.f32 %v365, %v370
    %v375 = vadd.f32 %v366, %v371
    %v376 = vadd.f32 %v367, %v372
    %v377 = vadd.f32 %v368, %v373
    %v378 = vstv %s162
    %v379 = vmul.f32 %v342, %v378
    %v380 = vmul.f32 %v343, %v378
    %v381 = vmul.f32 %v344, %v378
    %v382 = vmul.f32 %v345, %v378
    %v383 = vadd.f32 %v374, %v379
    %v384 = vadd.f32 %v375, %v380
    %v385 = vadd.f32 %v376, %v381
    %v386 = vadd.f32 %v377, %v382
    %v387 = vstv %s168
    %v388 = vadd.f32 %v383, %v387
    %v389 = vadd.f32 %v384, %v387
    %v390 = vadd.f32 %v385, %v387
    %v391 = vadd.f32 %v386, %v387
    %v392 = vtanh.pop %v388
    %v393 = vtanh.pop %v389
    %v394 = vtanh.pop %v390
    %v395 = vtanh.pop %v391
    %396 = vst [vmem:[%s5] sm:$0xff] %v392
    %397 = vst [vmem:[%s5 + $0x8] sm:$0xff] %v393
    %398 = vst [vmem:[%s5 + $0x10] sm:$0xff] %v394
    %399 = vst [vmem:[%s5 + $0x18] sm:$0xff] %v395
    %v400 = vstv %s163
    %v401 = vmul.f32 %v214, %v400
    %v402 = vmul.f32 %v215, %v400
    %v403 = vmul.f32 %v216, %v400
    %v404 = vmul.f32 %v217, %v400
    %v405 = vstv %s164
    %v406 = vmul.f32 %v246, %v405
    %v407 = vmul.f32 %v247, %v405
    %v408 = vmul.f32 %v248, %v405
    %v409 = vmul.f32 %v249, %v405
    %v410 = vadd.f32 %v401, %v406
    %v411 = vadd.f32 %v402, %v407
    %v412 = vadd.f32 %v403, %v408
    %v413 = vadd.f32 %v404, %v409
    %v414 = vstv %s165
    %v415 = vmul.f32 %v278, %v414
    %v416 = vmul.f32 %v279, %v414
    %v417 = vmul.f32 %v280, %v414
    %v418 = vmul.f32 %v281, %v414
    %v419 = vadd.f32 %v410, %v415
    %v420 = vadd.f32 %v411, %v416
    %v421 = vadd.f32 %v412, %v417
    %v422 = vadd.f32 %v413, %v418
    %v423 = vstv %s166
    %v424 = vmul.f32 %v310, %v423
    %v425 = vmul.f32 %v311, %v423
    %v426 = vmul.f32 %v312, %v423
    %v427 = vmul.f32 %v313, %v423
    %v428 = vadd.f32 %v419, %v424
    %v429 = vadd.f32 %v420, %v425
    %v430 = vadd.f32 %v421, %v426
    %v431 = vadd.f32 %v422, %v427
    %v432 = vstv %s167
    %v433 = vmul.f32 %v342, %v432
    %v434 = vmul.f32 %v343, %v432
    %v435 = vmul.f32 %v344, %v432
    %v436 = vmul.f32 %v345, %v432
    %v437 = vadd.f32 %v428, %v433
    %v438 = vadd.f32 %v429, %v434
    %v439 = vadd.f32 %v430, %v435
    %v440 = vadd.f32 %v431, %v436
    %v441 = vstv %s169
    %v442 = vadd.f32 %v437, %v441
    %v443 = vadd.f32 %v438, %v441
    %v444 = vadd.f32 %v439, %v441
    %v445 = vadd.f32 %v440, %v441
    %v446 = vtanh.pop %v442
    %v447 = vtanh.pop %v443
    %v448 = vtanh.pop %v444
    %v449 = vtanh.pop %v445
    %s450 = scalar_lea.vmem %s5, %s174
    %451 = vst [vmem:[%s450] sm:$0xff] %v446
    %452 = vst [vmem:[%s450 + $0x8] sm:$0xff] %v447
    %453 = vst [vmem:[%s450 + $0x10] sm:$0xff] %v448
    %454 = vst [vmem:[%s450 + $0x18] sm:$0xff] %v449
    // Predicated region
    $region38: #{mlp2_forward.2} parent=1 // pred_check
      _
    $region39: #{mlp2_forward.2} parent=1 // pred_check_branch
      %456 = sbr.rel (0) target = $region41
    $region40: #{mlp2_forward.2} parent=1 // pred_region
      _
    $region41: #{mlp2_forward.2} parent=1 // pred_fallthru
      _
    // Predicated region
    $region42: #{mlp2_forward.2} parent=1 // pred_check
      _
    $region43: #{mlp2_forward.2} parent=1 // pred_check_branch
      %458 = sbr.rel (0) target = $region45
    $region44: #{mlp2_forward.2} parent=1 // pred_region
      _
    $region45: #{mlp2_forward.2} parent=1 // pred_fallthru
      _
    %459 = vsyncpa [#allocation3], 1
    %460 = vsyncpa [#allocation5], 1
    %461 = vsyncpa [#allocation8], 1

</llo_original>
